<compile_context>
chip_gen: v5e
topology: v5e:2x2
jax: 0.10.0
libtpu: 0.0.40
codegen_flags: <defaults>
</compile_context>

<pallas_src>
import functools

import jax
import jax.numpy as jnp
import numpy as np
from jax import lax
from jax.experimental import pallas as pl
from jax.experimental.pallas import tpu as pltpu

EPS = 1e-5                      # nn.BatchNorm2d default
LANE = 128
# v5e/v6e (128 MiB physical VMEM) can raise this to 64-96 MiB with larger row blocks;
# keep <= ~48 MiB on v7x (64 MiB physical VMEM).
VMEM_LIMIT = 32 * 1024 * 1024


def _round_up(x, m):
    return (x + m - 1) // m * m


def _compiler_params():
    return pltpu.CompilerParams(
        dimension_semantics=("parallel", "parallel"),   # (batch, row-block) independent
        vmem_limit_bytes=VMEM_LIMIT,
    )


# ---------------------------------------------------------------------------
# In-kernel helpers
# ---------------------------------------------------------------------------
def _tap_contract(tap, ntaps, ck, w_ref):
    """acc = [tap(0) | tap(1) | ...] @ W with f32 accumulation on the MXU."""
    if ck % LANE == 0:
        patch = jnp.concatenate([tap(t) for t in range(ntaps)], axis=1)
        return jnp.dot(patch, w_ref[...], preferred_element_type=jnp.float32)
    # Tiny / lane-misaligned Cin: skip the narrow lane-concat, sum K=Cin dots instead.
    acc = jnp.dot(tap(0), w_ref[0:ck, :], preferred_element_type=jnp.float32)
    for t in range(1, ntaps):
        acc = acc + jnp.dot(tap(t), w_ref[t * ck:(t + 1) * ck, :],
                            preferred_element_type=jnp.float32)
    return acc


def _emit(acc, y_ref, stats_ref, tro, wo):
    """Write conv output (compute dtype) + per-tile BN partials (from the f32 acc)."""
    y_ref[0] = acc.reshape(tro, wo, -1).astype(y_ref.dtype)
    stats_ref[0, 0, 0:1, :] = jnp.sum(acc, axis=0, keepdims=True)
    stats_ref[0, 0, 1:2, :] = jnp.sum(acc * acc, axis=0, keepdims=True)


# ---------------------------------------------------------------------------
# Kernels
# ---------------------------------------------------------------------------
def conv_stats_kernel(x_ref, w_ref, y_ref, stats_ref, *, tro, wo, ck, khs, kws):
    """Unit-stride khs x kws conv of a pre-padded, VMEM-resident image + BN partials."""
    r0 = pl.multiple_of(pl.program_id(1) * tro, tro)
    m = tro * wo

    def tap(t):
        kh, kw = divmod(t, kws)
        return x_ref[0, pl.ds(r0 + kh, tro), kw:kw + wo, :].reshape(m, ck)

    acc = _tap_contract(tap, khs * kws, ck, w_ref)
    _emit(acc, y_ref, stats_ref, tro, wo)


def bn_relu_conv_stats_kernel(y1_ref, side_ref, w_ref, y2_ref, stats_ref, slab_ref, *,
                              tro, wo, c):
    """Fused bn1+relu -> 3x3 stride-1 pad-1 conv (+ bn2 partial stats).

    y1_raw is read from HBM exactly once; the activated, zero-bordered halo slab is
    built in VMEM scratch, so no padded / activated copy of y1 ever hits HBM.
    """
    ho = y1_ref.shape[1]
    r0 = pl.multiple_of(pl.program_id(1) * tro, tro)
    scale = side_ref[0:1, :].reshape(1, 1, c)
    shift = side_ref[1:2, :].reshape(1, 1, c)

    def act(rows):
        v = y1_ref[0, rows, :, :].astype(jnp.float32)
        return jnp.maximum(v * scale + shift, 0.0).astype(slab_ref.dtype)

    slab_ref[...] = jnp.zeros_like(slab_ref)                  # borders + missing halos
    slab_ref[1:tro + 1, 1:wo + 1, :] = act(pl.ds(r0, tro))    # bulk rows (always valid)

    @pl.when(r0 > 0)
    def _():                                                  # top halo row
        slab_ref[0:1, 1:wo + 1, :] = act(pl.ds(r0 - 1, 1))

    @pl.when(r0 + tro < ho)
    def _():                                                  # bottom halo row
        slab_ref[tro + 1:tro + 2, 1:wo + 1, :] = act(pl.ds(r0 + tro, 1))

    m = tro * wo

    def tap(t):
        kh, kw = divmod(t, 3)
        return slab_ref[kh:kh + tro, kw:kw + wo, :].reshape(m, c)

    acc = _tap_contract(tap, 9, c, w_ref)
    _emit(acc, y2_ref, stats_ref, tro, wo)


def bn_add_proj_relu_kernel(y_ref, side_ref, xsc_ref, wsc_ref, bsc_ref, out_ref):
    """out = relu(bn2(y2) + (x_sc @ w_sc + b_sc))  -- fused 1x1 projection shortcut."""
    _, tr, wo, cp = y_ref.shape
    cin = xsc_ref.shape[3]
    scale = side_ref[0:1, :].reshape(1, 1, cp)
    shift = side_ref[1:2, :].reshape(1, 1, cp)
    sc = jnp.dot(xsc_ref[0].reshape(tr * wo, cin), wsc_ref[...],
                 preferred_element_type=jnp.float32) + bsc_ref[...]
    y = y_ref[0].astype(jnp.float32) * scale + shift
    out_ref[0] = jnp.maximum(y + sc.reshape(tr, wo, cp), 0.0).astype(out_ref.dtype)


def bn_add_id_relu_kernel(y_ref, side_ref, xsc_ref, out_ref):
    """out = relu(bn2(y2) + x)  -- identity shortcut (plain VPU add)."""
    _, tr, wo, cp = y_ref.shape
    scale = side_ref[0:1, :].reshape(1, 1, cp)
    shift = side_ref[1:2, :].reshape(1, 1, cp)
    y = y_ref[0].astype(jnp.float32) * scale + shift
    out_ref[0] = jnp.maximum(y + xsc_ref[0].astype(jnp.float32), 0.0).astype(out_ref.dtype)


# ---------------------------------------------------------------------------
# pallas_call wrappers (grid = (batch, output-row blocks))
# ---------------------------------------------------------------------------
def _conv_pass(xin, wmat, khs, kws, tro, cp, compute_dtype):
    n, hi, wi, ck = xin.shape
    ho, wo = hi - khs + 1, wi - kws + 1
    nr = ho // tro
    kernel = functools.partial(conv_stats_kernel, tro=tro, wo=wo, ck=ck, khs=khs, kws=kws)
    return pl.pallas_call(
        kernel,
        out_shape=(jax.ShapeDtypeStruct((n, ho, wo, cp), compute_dtype),
                   jax.ShapeDtypeStruct((n, nr, 2, cp), jnp.float32)),
        grid=(n, nr),
        in_specs=[pl.BlockSpec((1, hi, wi, ck), lambda i, r: (i, 0, 0, 0)),   # resident
                  pl.BlockSpec((khs * kws * ck, cp), lambda i, r: (0, 0))],
        out_specs=(pl.BlockSpec((1, tro, wo, cp), lambda i, r: (i, r, 0, 0)),
                   pl.BlockSpec((1, 1, 2, cp), lambda i, r: (i, r, 0, 0))),
        compiler_params=_compiler_params(),
    )(xin, wmat)


def _bn_conv_pass(y1, side, wmat, tro, cp, compute_dtype):
    n, ho, wo, c = y1.shape
    nr = ho // tro
    kernel = functools.partial(bn_relu_conv_stats_kernel, tro=tro, wo=wo, c=c)
    return pl.pallas_call(
        kernel,
        out_shape=(jax.ShapeDtypeStruct((n, ho, wo, cp), compute_dtype),
                   jax.ShapeDtypeStruct((n, nr, 2, cp), jnp.float32)),
        grid=(n, nr),
        in_specs=[pl.BlockSpec((1, ho, wo, c), lambda i, r: (i, 0, 0, 0)),    # resident
                  pl.BlockSpec((2, c), lambda i, r: (0, 0)),
                  pl.BlockSpec((9 * c, cp), lambda i, r: (0, 0))],
        out_specs=(pl.BlockSpec((1, tro, wo, cp), lambda i, r: (i, r, 0, 0)),
                   pl.BlockSpec((1, 1, 2, cp), lambda i, r: (i, r, 0, 0))),
        scratch_shapes=[pltpu.VMEM((tro + 2, wo + 2, c), compute_dtype)],
        compiler_params=_compiler_params(),
    )(y1, side, wmat)


def _final_proj_pass(y2, side, x_sc, w_sc, b_sc, tro, out_dtype):
    n, ho, wo, cp = y2.shape
    cin = x_sc.shape[3]
    nr = ho // tro
    return pl.pallas_call(
        bn_add_proj_relu_kernel,
        out_shape=jax.ShapeDtypeStruct((n, ho, wo, cp), out_dtype),
        grid=(n, nr),
        in_specs=[pl.BlockSpec((1, tro, wo, cp), lambda i, r: (i, r, 0, 0)),
                  pl.BlockSpec((2, cp), lambda i, r: (0, 0)),
                  pl.BlockSpec((1, tro, wo, cin), lambda i, r: (i, r, 0, 0)),
                  pl.BlockSpec((cin, cp), lambda i, r: (0, 0)),
                  pl.BlockSpec((1, cp), lambda i, r: (0, 0))],
        out_specs=pl.BlockSpec((1, tro, wo, cp), lambda i, r: (i, r, 0, 0)),
        compiler_params=_compiler_params(),
    )(y2, side, x_sc, w_sc, b_sc)


def _final_id_pass(y2, side, x_sc, tro, out_dtype):
    n, ho, wo, cp = y2.shape
    nr = ho // tro
    return pl.pallas_call(
        bn_add_id_relu_kernel,
        out_shape=jax.ShapeDtypeStruct((n, ho, wo, cp), out_dtype),
        grid=(n, nr),
        in_specs=[pl.BlockSpec((1, tro, wo, cp), lambda i, r: (i, r, 0, 0)),
                  pl.BlockSpec((2, cp), lambda i, r: (0, 0)),
                  pl.BlockSpec((1, tro, wo, cp), lambda i, r: (i, r, 0, 0))],
        out_specs=pl.BlockSpec((1, tro, wo, cp), lambda i, r: (i, r, 0, 0)),
        compiler_params=_compiler_params(),
    )(y2, side, x_sc)


# ---------------------------------------------------------------------------
# Host glue: layouts, weights, BN reduction (plain JAX; all ~O(1x) copies at most)
# ---------------------------------------------------------------------------
def _prep_w3x3(w_oihw, ck_pad, cp, dtype):
    """(Cout,Cin,3,3) -> (9*ck_pad, cp) with tap-major rows [(kh,kw,ci)] matching the kernel."""
    cout, cin, kh, kw = w_oihw.shape
    wt = jnp.transpose(w_oihw, (2, 3, 1, 0))                          # (kh, kw, ci, co)
    wt = jnp.pad(wt, ((0, 0), (0, 0), (0, ck_pad - cin), (0, cp - cout)))
    return wt.reshape(kh * kw * ck_pad, cp).astype(dtype)


def _prep_w_s2(w_oihw, cp, dtype):
    """3x3 stride-2 weight -> equivalent 2x2 stride-1 weight over space-to-depth input."""
    cout, cin, _, _ = w_oihw.shape
    wt = jnp.transpose(w_oihw, (2, 3, 1, 0))                          # (3, 3, ci, co)
    zero = jnp.zeros((cin, cout), w_oihw.dtype)
    blocks = []
    for a in range(2):
        for b in range(2):
            for p in range(2):
                for q in range(2):
                    khi, kwi = 2 * a + p, 2 * b + q
                    blocks.append(wt[khi, kwi] if (khi < 3 and kwi < 3) else zero)
    wk = jnp.concatenate(blocks, axis=0)                              # (16*ci, co)
    return jnp.pad(wk, ((0, 0), (0, cp - cout))).astype(dtype)


def _space_to_depth_pad(x, ho, wo):
    """pad=1 + space-to-depth(2): (N,H,W,C) -> (N,Ho+1,Wo+1,4C) with channels (p,q,ci)."""
    n, h, w, c = x.shape
    ph = 2 * (ho + 1) - (h + 2)
    pw = 2 * (wo + 1) - (w + 2)
    xp = jnp.pad(x, ((0, 0), (1, 1 + ph), (1, 1 + pw), (0, 0)))
    xs = xp.reshape(n, ho + 1, 2, wo + 1, 2, c)
    xs = jnp.transpose(xs, (0, 1, 3, 2, 4, 5)).reshape(n, ho + 1, wo + 1, 4 * c)
    return xs


def _scale_shift(stats, gamma, beta, inv_m, cp):
    """Reduce per-tile (sum, sumsq) partials -> per-channel affine [scale; shift] (2, cp)."""
    s = jnp.sum(stats, axis=(0, 1))                                   # (2, cp)
    mean = s[0] * inv_m
    var = jnp.maximum(s[1] * inv_m - mean * mean, 0.0)                # one-pass biased var
    g = jnp.pad(gamma.astype(jnp.float32), (0, cp - gamma.shape[0]))
    b = jnp.pad(beta.astype(jnp.float32), (0, cp - beta.shape[0]))
    scale = g * lax.rsqrt(var + EPS)
    shift = b - mean * scale
    return jnp.stack([scale, shift], axis=0)


def _pick_rows(ho, wo, block_rows, target=512):
    if block_rows is not None:
        assert ho % block_rows == 0, "block_rows must divide the output height"
        return block_rows
    best = 1
    for d in range(1, ho + 1):
        if ho % d == 0 and d * wo <= max(target, wo):
            best = d
    return best


def residual_forward(x_nchw, p, *, use_1x1conv, strides,
                     compute_dtype=jnp.bfloat16, block_rows=None):
    x = jnp.transpose(x_nchw, (0, 2, 3, 1)).astype(jnp.float32)       # NCHW -> NHWC
    n, h, w, cin = x.shape
    cout = p["conv1_w"].shape[0]
    cp = _round_up(cout, LANE)

    # ---- conv1 (3x3, stride=strides, pad=1) as a unit-stride conv + bn1 partials ----
    if strides == 1:
        ho, wo = h, w
        xin = jnp.pad(x, ((0, 0), (1, 1), (1, 1), (0, 0))).astype(compute_dtype)
        w1 = _prep_w3x3(p["conv1_w"], cin, cp, compute_dtype)
        khs = kws = 3
    elif strides == 2:
        ho, wo = (h - 1) // 2 + 1, (w - 1) // 2 + 1
        xin = _space_to_depth_pad(x, ho, wo).astype(compute_dtype)
        w1 = _prep_w_s2(p["conv1_w"], cp, compute_dtype)
        khs = kws = 2
    else:
        # TODO(synk): generalize the space-to-depth trick to stride > 2.
        raise NotImplementedError("residual_forward supports strides in {1, 2}")

    tro = _pick_rows(ho, wo, block_rows)
    inv_m = 1.0 / float(n * ho * wo)

    y1_raw, stats1 = _conv_pass(xin, w1, khs, kws, tro, cp, compute_dtype)
    side1 = _scale_shift(stats1, p["bn1_gamma"], p["bn1_beta"], inv_m, cp)

    # ---- fused bn1+relu -> conv2 (3x3, stride 1, pad 1) + bn2 partials ----
    w2 = _prep_w3x3(p["conv2_w"], cp, cp, compute_dtype)
    y2_raw, stats2 = _bn_conv_pass(y1_raw, side1, w2, tro, cp, compute_dtype)
    side2 = _scale_shift(stats2, p["bn2_gamma"], p["bn2_beta"], inv_m, cp)

    # ---- bn2 + shortcut + relu ----
    if use_1x1conv:
        x_sc = x[:, ::strides, ::strides, :].astype(compute_dtype)    # (n, ho, wo, cin)
        w_sc = jnp.pad(jnp.transpose(p["conv3_w"][:, :, 0, 0], (1, 0)),
                       ((0, 0), (0, cp - cout))).astype(compute_dtype)
        b_sc = jnp.pad(p["conv3_b"], (0, cp - cout)).reshape(1, cp).astype(jnp.float32)
        out = _final_proj_pass(y2_raw, side2, x_sc, w_sc, b_sc, tro, compute_dtype)
    else:
        assert strides == 1 and cin == cout, "identity shortcut needs matching shapes"
        x_sc = jnp.pad(x, ((0, 0), (0, 0), (0, 0), (0, cp - cin))).astype(compute_dtype)
        out = _final_id_pass(y2_raw, side2, x_sc, tro, compute_dtype)

    out = out[:, :, :, :cout]
    return jnp.transpose(out, (0, 3, 1, 2))                           # back to NCHW


# ---------------------------------------------------------------------------
# Deterministic parameter init (shapes from Residual.__init__)
# ---------------------------------------------------------------------------
def init_params(key, input_channels, num_channels, use_1x1conv):
    k1, k2, k3, k4, k5, k6 = jax.random.split(key, 6)
    p = {
        "conv1_w": 0.1 * jax.random.normal(k1, (num_channels, input_channels, 3, 3), jnp.float32),
        "conv1_b": 0.1 * jax.random.normal(k2, (num_channels,), jnp.float32),
        "conv2_w": 0.1 * jax.random.normal(k3, (num_channels, num_channels, 3, 3), jnp.float32),
        "conv2_b": 0.1 * jax.random.normal(k4, (num_channels,), jnp.float32),
        "bn1_gamma": jnp.ones((num_channels,), jnp.float32),
        "bn1_beta": jnp.zeros((num_channels,), jnp.float32),
        "bn2_gamma": jnp.ones((num_channels,), jnp.float32),
        "bn2_beta": jnp.zeros((num_channels,), jnp.float32),
    }
    if use_1x1conv:
        p["conv3_w"] = 0.1 * jax.random.normal(k5, (num_channels, input_channels, 1, 1), jnp.float32)
        p["conv3_b"] = 0.1 * jax.random.normal(k6, (num_channels,), jnp.float32)
    return p


# ---------------------------------------------------------------------------
# Pure-JAX reference (matches the PyTorch module incl. conv biases)
# ---------------------------------------------------------------------------
def _ref_forward(x, p, use_1x1conv, strides):
    def conv(x, w, b, stride, pad):
        y = lax.conv_general_dilated(x, w, (stride, stride), [(pad, pad), (pad, pad)],
                                     dimension_numbers=("NCHW", "OIHW", "NCHW"))
        return y + b.reshape(1, -1, 1, 1)

    def bn(x, g, b):
        mean = jnp.mean(x, axis=(0, 2, 3), keepdims=True)
        var = jnp.mean((x - mean) ** 2, axis=(0, 2, 3), keepdims=True)
        return (x - mean) * lax.rsqrt(var + EPS) * g.reshape(1, -1, 1, 1) + b.reshape(1, -1, 1, 1)

    y = jax.nn.relu(bn(conv(x, p["conv1_w"], p["conv1_b"], strides, 1), p["bn1_gamma"], p["bn1_beta"]))
    y = bn(conv(y, p["conv2_w"], p["conv2_b"], 1, 1), p["bn2_gamma"], p["bn2_beta"])
    xs = conv(x, p["conv3_w"], p["conv3_b"], strides, 0) if use_1x1conv else x
    return jax.nn.relu(y + xs)


if __name__ == "__main__":
    key = jax.random.PRNGKey(0)
    kx, kp = jax.random.split(key)
    x = jax.random.uniform(kx, (2, 4, 16, 16), jnp.float32)

    # Case 1: projection shortcut (use_1x1conv=True, strides=2): (2,4,16,16) -> (2,8,8,8)
    params = init_params(kp, 4, 8, True)
    ref = _ref_forward(x, params, True, 2)

    # f32 path: tight check against the PyTorch-equivalent reference (single row block/img).
    out = jax.block_until_ready(residual_forward(
        x, params, use_1x1conv=True, strides=2, compute_dtype=jnp.float32))
    assert out.shape == (2, 8, 8, 8)
    np.testing.assert_allclose(np.asarray(out), np.asarray(ref), atol=5e-4, rtol=5e-4)

    # bf16 production path with 4-row blocks (exercises the halo pl.when branches and the
    # bf16 intermediates / bf16 final output).
    out_bf16 = jax.block_until_ready(residual_forward(
        x, params, use_1x1conv=True, strides=2, compute_dtype=jnp.bfloat16, block_rows=4))
    np.testing.assert_allclose(np.asarray(out_bf16.astype(jnp.float32)), np.asarray(ref),
                               atol=2e-1, rtol=1e-1)

    # Case 2: identity shortcut (use_1x1conv=False, strides=1): (2,4,16,16) -> (2,4,16,16)
    # 4-row blocks -> grid (2, 4), exercising the multi-tile stats reduction + fused bn1.
    params2 = init_params(kp, 4, 4, False)
    out2 = jax.block_until_ready(residual_forward(
        x, params2, use_1x1conv=False, strides=1, compute_dtype=jnp.float32, block_rows=4))
    assert out2.shape == (2, 4, 16, 16)
    ref2 = _ref_forward(x, params2, False, 1)
    np.testing.assert_allclose(np.asarray(out2), np.asarray(ref2), atol=5e-4, rtol=5e-4)

    print("KERNEL_OK")
</pallas_src>

<mosaic_0001>
module attributes {stable_mosaic.version = 11 : i64} {
  func.func @conv_stats_kernel(%arg0: i32, %arg1: i32, %arg2: memref<1x9x9x16xf32, #tpu.memory_space<vmem>>, %arg3: memref<64x128xf32, #tpu.memory_space<vmem>>, %arg4: memref<1x8x8x128xf32, #tpu.memory_space<vmem>>, %arg5: memref<1x1x2x128xf32, #tpu.memory_space<vmem>>) attributes {dimension_semantics = [#tpu.dimension_semantics<parallel>, #tpu.dimension_semantics<parallel>], iteration_bounds = array<i64: 2, 1>, scalar_prefetch = 0 : i64, scratch_operands = 0 : i64, tpu.core_type = #tpu.core_type<tc>, window_params = [{transform_indices = @transform_0, window_bounds = array<i64: 1, 9, 9, 16>}, {pipeline_mode = #tpu.pipeline_mode<synchronous>, transform_indices = @transform_1, window_bounds = array<i64: 64, 128>}, {transform_indices = @transform_2, window_bounds = array<i64: 1, 8, 8, 128>}, {transform_indices = @transform_3, window_bounds = array<i64: 1, 1, 2, 128>}]} {
    %c8_i32 = arith.constant 8 : i32
    %0 = arith.muli %arg1, %c8_i32 : i32
    %1 = tpu.assume_multiple %0, 8 : i32
    %c0_i32 = arith.constant 0 : i32
    %2 = arith.addi %1, %c0_i32 : i32
    %c0 = arith.constant 0 : index
    %3 = arith.index_cast %2 : i32 to index
    %c0_0 = arith.constant 0 : index
    %c0_1 = arith.constant 0 : index
    %4 = vector.load %arg2[%c0, %3, %c0_0, %c0_1] : memref<1x9x9x16xf32, #tpu.memory_space<vmem>>, vector<1x8x8x16xf32>
    %5 = vector.shape_cast %4 : vector<1x8x8x16xf32> to vector<8x8x16xf32>
    %6 = vector.shape_cast %5 : vector<8x8x16xf32> to vector<64x16xf32>
    %c0_2 = arith.constant 0 : index
    %c0_3 = arith.constant 0 : index
    %7 = vector.load %arg3[%c0_2, %c0_3] : memref<64x128xf32, #tpu.memory_space<vmem>>, vector<16x128xf32>
    %cst = arith.constant dense<0.000000e+00> : vector<64x128xf32>
    %8 = tpu.matmul %6, %7, %cst {dimension_numbers = #tpu.dot_dimension_numbers<[1], [0], [0], [1], [0, 0, 1, 1], [], []>} : vector<64x16xf32>, vector<16x128xf32>, vector<64x128xf32> -> vector<64x128xf32>
    %c0_i32_4 = arith.constant 0 : i32
    %9 = arith.addi %1, %c0_i32_4 : i32
    %c0_5 = arith.constant 0 : index
    %10 = arith.index_cast %9 : i32 to index
    %c1 = arith.constant 1 : index
    %c0_6 = arith.constant 0 : index
    %11 = vector.load %arg2[%c0_5, %10, %c1, %c0_6] : memref<1x9x9x16xf32, #tpu.memory_space<vmem>>, vector<1x8x8x16xf32>
    %12 = vector.shape_cast %11 : vector<1x8x8x16xf32> to vector<8x8x16xf32>
    %13 = vector.shape_cast %12 : vector<8x8x16xf32> to vector<64x16xf32>
    %c16 = arith.constant 16 : index
    %c0_7 = arith.constant 0 : index
    %14 = vector.load %arg3[%c16, %c0_7] : memref<64x128xf32, #tpu.memory_space<vmem>>, vector<16x128xf32>
    %cst_8 = arith.constant dense<0.000000e+00> : vector<64x128xf32>
    %15 = tpu.matmul %13, %14, %cst_8 {dimension_numbers = #tpu.dot_dimension_numbers<[1], [0], [0], [1], [0, 0, 1, 1], [], []>} : vector<64x16xf32>, vector<16x128xf32>, vector<64x128xf32> -> vector<64x128xf32>
    %16 = arith.addf %8, %15 : vector<64x128xf32>
    %c1_i32 = arith.constant 1 : i32
    %17 = arith.addi %1, %c1_i32 : i32
    %c0_9 = arith.constant 0 : index
    %18 = arith.index_cast %17 : i32 to index
    %c0_10 = arith.constant 0 : index
    %c0_11 = arith.constant 0 : index
    %19 = vector.load %arg2[%c0_9, %18, %c0_10, %c0_11] : memref<1x9x9x16xf32, #tpu.memory_space<vmem>>, vector<1x8x8x16xf32>
    %20 = vector.shape_cast %19 : vector<1x8x8x16xf32> to vector<8x8x16xf32>
    %21 = vector.shape_cast %20 : vector<8x8x16xf32> to vector<64x16xf32>
    %c32 = arith.constant 32 : index
    %c0_12 = arith.constant 0 : index
    %22 = vector.load %arg3[%c32, %c0_12] : memref<64x128xf32, #tpu.memory_space<vmem>>, vector<16x128xf32>
    %cst_13 = arith.constant dense<0.000000e+00> : vector<64x128xf32>
    %23 = tpu.matmul %21, %22, %cst_13 {dimension_numbers = #tpu.dot_dimension_numbers<[1], [0], [0], [1], [0, 0, 1, 1], [], []>} : vector<64x16xf32>, vector<16x128xf32>, vector<64x128xf32> -> vector<64x128xf32>
    %24 = arith.addf %16, %23 : vector<64x128xf32>
    %c1_i32_14 = arith.constant 1 : i32
    %25 = arith.addi %1, %c1_i32_14 : i32
    %c0_15 = arith.constant 0 : index
    %26 = arith.index_cast %25 : i32 to index
    %c1_16 = arith.constant 1 : index
    %c0_17 = arith.constant 0 : index
    %27 = vector.load %arg2[%c0_15, %26, %c1_16, %c0_17] : memref<1x9x9x16xf32, #tpu.memory_space<vmem>>, vector<1x8x8x16xf32>
    %28 = vector.shape_cast %27 : vector<1x8x8x16xf32> to vector<8x8x16xf32>
    %29 = vector.shape_cast %28 : vector<8x8x16xf32> to vector<64x16xf32>
    %c48 = arith.constant 48 : index
    %c0_18 = arith.constant 0 : index
    %30 = vector.load %arg3[%c48, %c0_18] : memref<64x128xf32, #tpu.memory_space<vmem>>, vector<16x128xf32>
    %cst_19 = arith.constant dense<0.000000e+00> : vector<64x128xf32>
    %31 = tpu.matmul %29, %30, %cst_19 {dimension_numbers = #tpu.dot_dimension_numbers<[1], [0], [0], [1], [0, 0, 1, 1], [], []>} : vector<64x16xf32>, vector<16x128xf32>, vector<64x128xf32> -> vector<64x128xf32>
    %32 = arith.addf %24, %31 : vector<64x128xf32>
    %33 = vector.shape_cast %32 : vector<64x128xf32> to vector<8x8x128xf32>
    %c0_20 = arith.constant 0 : index
    %c0_21 = arith.constant 0 : index
    %c0_22 = arith.constant 0 : index
    %c0_23 = arith.constant 0 : index
    %34 = vector.load %arg4[%c0_20, %c0_21, %c0_22, %c0_23] : memref<1x8x8x128xf32, #tpu.memory_space<vmem>>, vector<1x8x8x128xf32>
    %35 = vector.shape_cast %34 : vector<1x8x8x128xf32> to vector<8x8x128xf32>
    %36 = vector.shape_cast %33 : vector<8x8x128xf32> to vector<1x8x8x128xf32>
    tpu.vector_store %arg4[%c0_20, %c0_21, %c0_22, %c0_23], %36 {strides = array<i32>} : memref<1x8x8x128xf32, #tpu.memory_space<vmem>>, vector<1x8x8x128xf32>,
    %cst_24 = arith.constant dense<0.000000e+00> : vector<128xf32>
    %37 = vector.multi_reduction <add>, %32, %cst_24 [0] : vector<64x128xf32> to vector<128xf32>
    %38 = vector.shape_cast %37 : vector<128xf32> to vector<1x128xf32>
    %c0_25 = arith.constant 0 : index
    %c0_26 = arith.constant 0 : index
    %c0_27 = arith.constant 0 : index
    %c0_28 = arith.constant 0 : index
    %39 = vector.load %arg5[%c0_25, %c0_26, %c0_27, %c0_28] : memref<1x1x2x128xf32, #tpu.memory_space<vmem>>, vector<1x1x1x128xf32>
    %40 = vector.shape_cast %39 : vector<1x1x1x128xf32> to vector<1x128xf32>
    %41 = vector.shape_cast %38 : vector<1x128xf32> to vector<1x1x1x128xf32>
    tpu.vector_store %arg5[%c0_25, %c0_26, %c0_27, %c0_28], %41 {strides = array<i32>} : memref<1x1x2x128xf32, #tpu.memory_space<vmem>>, vector<1x1x1x128xf32>,
    %42 = arith.mulf %32, %32 : vector<64x128xf32>
    %cst_29 = arith.constant dense<0.000000e+00> : vector<128xf32>
    %43 = vector.multi_reduction <add>, %42, %cst_29 [0] : vector<64x128xf32> to vector<128xf32>
    %44 = vector.shape_cast %43 : vector<128xf32> to vector<1x128xf32>
    %c0_30 = arith.constant 0 : index
    %c0_31 = arith.constant 0 : index
    %c1_32 = arith.constant 1 : index
    %c0_33 = arith.constant 0 : index
    %45 = vector.load %arg5[%c0_30, %c0_31, %c1_32, %c0_33] : memref<1x1x2x128xf32, #tpu.memory_space<vmem>>, vector<1x1x1x128xf32>
    %46 = vector.shape_cast %45 : vector<1x1x1x128xf32> to vector<1x128xf32>
    %47 = vector.shape_cast %44 : vector<1x128xf32> to vector<1x1x1x128xf32>
    tpu.vector_store %arg5[%c0_30, %c0_31, %c1_32, %c0_33], %47 {strides = array<i32>} : memref<1x1x2x128xf32, #tpu.memory_space<vmem>>, vector<1x1x1x128xf32>,
    return
  }
  func.func @transform_0(%arg0: i32, %arg1: i32) -> (i32, i32, i32, i32) {
    %c0_i32 = arith.constant 0 : i32
    %c0_i32_0 = arith.constant 0 : i32
    %c0_i32_1 = arith.constant 0 : i32
    %c0_i32_2 = arith.constant 0 : i32
    return %arg0, %c0_i32, %c0_i32_0, %c0_i32_1 : i32, i32, i32, i32
  }
  func.func @transform_1(%arg0: i32, %arg1: i32) -> (i32, i32) {
    %c0_i32 = arith.constant 0 : i32
    %c0_i32_0 = arith.constant 0 : i32
    %c0_i32_1 = arith.constant 0 : i32
    return %c0_i32, %c0_i32_0 : i32, i32
  }
  func.func @transform_2(%arg0: i32, %arg1: i32) -> (i32, i32, i32, i32) {
    %c0_i32 = arith.constant 0 : i32
    %c0_i32_0 = arith.constant 0 : i32
    %c0_i32_1 = arith.constant 0 : i32
    return %arg0, %arg1, %c0_i32, %c0_i32_0 : i32, i32, i32, i32
  }
  func.func @transform_3(%arg0: i32, %arg1: i32) -> (i32, i32, i32, i32) {
    %c0_i32 = arith.constant 0 : i32
    %c0_i32_0 = arith.constant 0 : i32
    %c0_i32_1 = arith.constant 0 : i32
    return %arg0, %arg1, %c0_i32, %c0_i32_0 : i32, i32, i32, i32
  }
}

</mosaic_0001>

<llo_original>
// kernel: tpu_custom_call.1
$region0: #{tpu_custom_call.1}
  #allocation0 [shape = 'u32[]', space=smem, size = 0x4, offset = 0x4, fixed_abs, tag = 'smem constant byte address 0x4 - core index']
  #allocation1 [shape = 'u32[72,128]{1,0:T(1,128)}', space=vmem, size = 0x9000, scoped, tag = 'internal scratch']
  %s0 = inlined_call_operand.vmem [shape: f32[2,9,9,16], index: 0, kind: input, shape index: {}]
  %s1 = inlined_call_operand.vmem [shape: f32[64,128], index: 1, kind: input, shape index: {}]
  %s2 = inlined_call_operand.hbm [shape: f32[2,8,8,128], index: 2, kind: output, shape index: {0}]
  %s3 = inlined_call_operand.hbm [shape: f32[2,1,2,128], index: 3, kind: output, shape index: {1}]
  %4 = xla_tuple %s2, %s3
  %s5 = sld [smem:[#allocation0]]
  $region49: #{tpu_custom_call.1} parent=0
    _
  %s7 = ssub.s32 1, %s5
  %s8 = scalar_select 0, %s7, %s5
  $region1: #{tpu_custom_call.1} parent=0
    #allocation2 [shape = 'u8[65536]{0}', space=vmem, size = 0x10000, scoped, tag = 'output window, operand 0']
    #allocation3 [shape = 's32[2]{0}', space=sflag, size = 0x8, scoped, tag = 'scoped memory for tpu_custom_call.1']
    #allocation4 [shape = 'u8[2048]{0}', space=vmem, size = 0x800, scoped, tag = 'output window, operand 1']
    #allocation5 [shape = 's32[2]{0}', space=sflag, size = 0x8, scoped, tag = 'scoped memory for tpu_custom_call.1']
    %9 = vsyncpa [#allocation3], 0
    %s10 = scalar_lea.sflag [#allocation3], 1
    %11 = vsyncpa %s10, 0
    %12 = vsyncpa [#allocation5], 0
    %s13 = scalar_lea.sflag [#allocation5], 1
    %14 = vsyncpa %s13, 0
    loop: start=0, step=1, limit=4
    $region2: #{tpu_custom_call.1} parent=1 // loop_pre_header
      _
    $region3: #{tpu_custom_call.1} parent=1 // loop_header
      %s16 = sphi 0, %s20
      %p17 = scmp.ge.s32.totalorder %s16, 4
      %s23 = sphi 0, %s35
      %s24 = sphi 0, %s31
      %s25 = sphi 0, %s23
      %s26 = sphi 0, %s24
      %s27 = sphi 0, %s25
      %s28 = sphi 0, %s26
      %s38 = sphi 0, %s40
      %s41 = sphi 0, %s38
      %s42 = sphi 0, %s41
      %s58 = sphi 0, %s42
      %s62 = sphi 0, %s62
      %s64 = sphi 0, %s62
      %s65 = sphi 0, %s64
      %s79 = sphi 0, %s65
      %s87 = sphi 0, %s89
      %s90 = sphi 0, %s87
      %s91 = sphi 0, %s90
      %s107 = sphi 0, %s91
      %s115 = sphi 0, %s117
      %s118 = sphi 0, %s115
      %s119 = sphi 0, %s118
      %s135 = sphi 0, %s119
    $region4: #{tpu_custom_call.1} parent=1 // loop_header_branch
      %19 = sbr.rel (%p17) target = $region8
    $region5: #{tpu_custom_call.1} parent=1 // loop_body
      %s21 = ssub.s32 %s16, 1
      %s22 = ssub.s32 %s16, 2
      %s29 = sadd.s32 1, %s24
      %p30 = scmp.ge.s32.totalorder %s29, 1
      %s31 = scalar_select %p30, 0, %s29
      %s32 = sadd.s32 1, %s23
      %s33 = scalar_select %p30, %s32, %s23
      %p34 = scmp.ge.s32.totalorder %s33, 2
      %s35 = scalar_select %p34, 0, %s33
      %s36 = ssub.s32 %s23, %s35
      %p37 = scmp.eq.s32.totalorder %s36, 0
      %s39 = sadd.s32 %s38, 1
      %s40 = scalar_select %p37, %s38, %s39
      %p43 = pneg %p37
      %p44 = scmp.eq.s32.totalorder %s16, 1
      %p45 = por %p43, %p44
      %p46 = scmp.ne.s32.totalorder %s38, %s41
      %p47 = scmp.eq.s32.totalorder %s16, 0
      %p48 = por %p46, %p47
      %p49 = scmp.ne.s32.totalorder %s38, %s41
      %p50 = scmp.eq.s32.totalorder %s21, 1
      %p51 = por %p49, %p50
      %p52 = scmp.ne.s32.totalorder %s41, %s42
      %p53 = scmp.eq.s32.totalorder %s21, 0
      %p54 = por %p52, %p53
      %p55 = scmp.ne.s32.totalorder %s41, %s42
      %p56 = scmp.eq.s32.totalorder %s22, 1
      %p57 = por %p55, %p56
      %p59 = scmp.ne.s32.totalorder %s42, %s58
      %p60 = scmp.eq.s32.totalorder %s22, 0
      %p61 = por %p59, %p60
      %s63 = sadd.s32 %s62, 1
      %p66 = scmp.eq.s32.totalorder %s16, 1
      %p67 = scmp.ne.s32.totalorder %s62, %s64
      %p68 = scmp.eq.s32.totalorder %s16, 0
      %p69 = por %p67, %p68
      %p70 = scmp.ne.s32.totalorder %s62, %s64
      %p71 = scmp.eq.s32.totalorder %s21, 1
      %p72 = por %p70, %p71
      %p73 = scmp.ne.s32.totalorder %s64, %s65
      %p74 = scmp.eq.s32.totalorder %s21, 0
      %p75 = por %p73, %p74
      %p76 = scmp.ne.s32.totalorder %s64, %s65
      %p77 = scmp.eq.s32.totalorder %s22, 1
      %p78 = por %p76, %p77
      %p80 = scmp.ne.s32.totalorder %s65, %s79
      %p81 = scmp.eq.s32.totalorder %s22, 0
      %p82 = por %p80, %p81
      %s83 = ssub.s32 %s23, %s35
      %s84 = ssub.s32 %s24, %s31
      %s85 = sor.u32 %s83, %s84
      %p86 = scmp.eq.s32.totalorder %s85, 0
      %s88 = sadd.s32 %s87, 1
      %s89 = scalar_select %p86, %s87, %s88
      %p92 = pneg %p86
      %p93 = scmp.eq.s32.totalorder %s16, 1
      %p94 = por %p92, %p93
      %p95 = scmp.ne.s32.totalorder %s87, %s90
      %p96 = scmp.eq.s32.totalorder %s16, 0
      %p97 = por %p95, %p96
      %p98 = scmp.ne.s32.totalorder %s87, %s90
      %p99 = scmp.eq.s32.totalorder %s21, 1
      %p100 = por %p98, %p99
      %p101 = scmp.ne.s32.totalorder %s90, %s91
      %p102 = scmp.eq.s32.totalorder %s21, 0
      %p103 = por %p101, %p102
      %p104 = scmp.ne.s32.totalorder %s90, %s91
      %p105 = scmp.eq.s32.totalorder %s22, 1
      %p106 = por %p104, %p105
      %p108 = scmp.ne.s32.totalorder %s91, %s107
      %p109 = scmp.eq.s32.totalorder %s22, 0
      %p110 = por %p108, %p109
      %s111 = ssub.s32 %s23, %s35
      %s112 = ssub.s32 %s24, %s31
      %s113 = sor.u32 %s111, %s112
      %p114 = scmp.eq.s32.totalorder %s113, 0
      %s116 = sadd.s32 %s115, 1
      %s117 = scalar_select %p114, %s115, %s116
      %p120 = pneg %p114
      %p121 = scmp.eq.s32.totalorder %s16, 1
      %p122 = por %p120, %p121
      %p123 = scmp.ne.s32.totalorder %s115, %s118
      %p124 = scmp.eq.s32.totalorder %s16, 0
      %p125 = por %p123, %p124
      %p126 = scmp.ne.s32.totalorder %s115, %s118
      %p127 = scmp.eq.s32.totalorder %s21, 1
      %p128 = por %p126, %p127
      %p129 = scmp.ne.s32.totalorder %s118, %s119
      %p130 = scmp.eq.s32.totalorder %s21, 0
      %p131 = por %p129, %p130
      %p132 = scmp.ne.s32.totalorder %s118, %s119
      %p133 = scmp.eq.s32.totalorder %s22, 1
      %p134 = por %p132, %p133
      %p136 = scmp.ne.s32.totalorder %s119, %s135
      %p137 = scmp.eq.s32.totalorder %s22, 0
      %p138 = por %p136, %p137
      %p139 = scmp.le.s32.totalorder 1, %s16
      %p140 = scmp.lt.s32.totalorder %s16, 3
      %p141 = pnand %p139, %p140
      %p142 = pneg %p141
      // Predicated region
      $region9: #{tpu_custom_call.1} parent=5 // pred_check
        _
      $region10: #{tpu_custom_call.1} parent=5 // pred_check_branch
        %144 = sbr.rel (%p141) target = $region12
      $region11: #{tpu_custom_call.1} parent=5 // pred_region
        %s145 = ssub.s32 %s16, 1
        // Predicated region
        $region13: #{tpu_custom_call.1} parent=11 // pred_check
          %p146 = pneg %p75
        $region14: #{tpu_custom_call.1} parent=11 // pred_check_branch
          %148 = sbr.rel (%p146) target = $region16
        $region15: #{tpu_custom_call.1} parent=11 // pred_region
          _
        $region16: #{tpu_custom_call.1} parent=11 // pred_fallthru
          _
      $region12: #{tpu_custom_call.1} parent=5 // pred_fallthru
        _
      %p149 = scmp.lt.s32.totalorder %s16, 2
      // Predicated region
      $region17: #{tpu_custom_call.1} parent=5 // pred_check
        %p150 = pneg %p149
      $region18: #{tpu_custom_call.1} parent=5 // pred_check_branch
        %152 = sbr.rel (%p150) target = $region20
      $region19: #{tpu_custom_call.1} parent=5 // pred_region
        // Predicated region
        $region21: #{tpu_custom_call.1} parent=19 // pred_check
          %p153 = pneg %p48
        $region22: #{tpu_custom_call.1} parent=19 // pred_check_branch
          %155 = sbr.rel (%p153) target = $region24
        $region23: #{tpu_custom_call.1} parent=19 // pred_region
          %p156 = scmp.lt.s32.totalorder %s23, 1
          %s157 = scalar_select %p156, %s23, 1
          %s158 = smul.addr %s157, 18
          %s159 = smul.addr %s158, 8
          %s160 = scalar_lea.vmem %s0, %s159
        $region24: #{tpu_custom_call.1} parent=19 // pred_fallthru
          _
      $region20: #{tpu_custom_call.1} parent=5 // pred_fallthru
        _
      %p161 = scmp.le.s32.totalorder 1, %s16
      %p162 = scmp.lt.s32.totalorder %s16, 3
      %p163 = pnand %p161, %p162
      %p164 = pneg %p163
      // Predicated region
      $region25: #{tpu_custom_call.1} parent=5 // pred_check
        _
      $region26: #{tpu_custom_call.1} parent=5 // pred_check_branch
        %166 = sbr.rel (%p163) target = $region28
      $region27: #{tpu_custom_call.1} parent=5 // pred_region
        %s167 = ssub.s32 %s16, 1
        %p168 = scmp.lt.s32.totalorder %s25, 1
        %s169 = scalar_select %p168, %s25, 1
        %s170 = smul.addr %s169, 18
        %s171 = smul.addr %s170, 8
        %s172 = scalar_lea.vmem %s0, %s171
        %p173 = pneg %p54
        %p174 = pneg %p51
        %p175 = pneg %p75
        %p176 = pneg %p72
        %p177 = pneg %p103
        %p178 = pneg %p100
        %s179 = sand.u32 %s90, 1
        %s180 = scalar_lea.sflag [#allocation3], %s179
        %s181 = sand.u32 %s90, 1
        %s182 = smul.addr %s181, 64
        %s183 = scalar_lea.vmem [#allocation2], %s182
        %p184 = pneg %p131
        %p185 = pneg %p128
        %s186 = sand.u32 %s118, 1
        %s187 = scalar_lea.sflag [#allocation5], %s186
        %s188 = sand.u32 %s118, 1
        %s189 = smul.addr %s188, 2
        %s190 = scalar_lea.vmem [#allocation4], %s189
        %p191 = scmp.lt.s32.totalorder %s25, 1
        %s192 = scalar_select %p191, %s25, 1
        %s193 = smul.addr %s192, 18
        %s194 = smul.addr %s193, 8
        %s195 = scalar_lea.vmem %s0, %s194
        %s196 = smul.u32 8, %s26
        %s197 = smul.u32 %s26, 8
        %s198 = smul.u32 %s197, 16
        %s199 = scalar_lea.vmem %s195, %s198
        %v200 = vld [vmem:[%s199] sm:$0xff]
        %v201 = vld [vmem:[%s199 + $0x10] sm:$0xff]
        %v202 = vld [vmem:[%s199 + $0x20] sm:$0xff]
        %v203 = vld [vmem:[%s199 + $0x30] sm:$0xff]
        %v204 = vld [vmem:[%s199 + $0x40] sm:$0xff]
        %v205 = vld [vmem:[%s199 + $0x50] sm:$0xff]
        %v206 = vld [vmem:[%s199 + $0x60] sm:$0xff]
        %v207 = vld [vmem:[%s199 + $0x70] sm:$0xff]
        %v208 = vld [vmem:[%s1] sm:$0xff]
        %v209 = vld [vmem:[%s1 + $0x8] sm:$0xff]
        %v210 = vld [vmem:[%s199 + $0x1] sm:$0xff]
        %v211 = vld [vmem:[%s199 + $0x11] sm:$0xff]
        %v212 = vld [vmem:[%s199 + $0x21] sm:$0xff]
        %v213 = vld [vmem:[%s199 + $0x31] sm:$0xff]
        %v214 = vld [vmem:[%s199 + $0x41] sm:$0xff]
        %v215 = vld [vmem:[%s199 + $0x51] sm:$0xff]
        %v216 = vld [vmem:[%s199 + $0x61] sm:$0xff]
        %v217 = vld [vmem:[%s199 + $0x71] sm:$0xff]
        %v218 = vld [vmem:[%s1 + $0x10] sm:$0xff]
        %v219 = vld [vmem:[%s1 + $0x18] sm:$0xff]
        %vm220 = vcmask 130048
        %v222 = vsel %vm220, %v210, 0
        %v225 = vsel %vm220, %v211, 0
        %v228 = vsel %vm220, %v212, 0
        %v231 = vsel %vm220, %v213, 0
        %v234 = vsel %vm220, %v214, 0
        %v237 = vsel %vm220, %v215, 0
        %v240 = vsel %vm220, %v216, 0
        %v243 = vsel %vm220, %v217, 0
        %245 = vmatpush.msra.mxu0 0.0
        %246 = vmatpush.msra.mxu0 0.0
        %247 = vmatpush.msra.mxu0 0.0
        %248 = vmatpush.msra.mxu0 0.0
        %249 = vmatpush.msra.mxu0 0.0
        %250 = vmatpush.msra.mxu0 0.0
        %251 = vmatpush.msra.mxu0 0.0
        %252 = vmatpush.msra.mxu0 0.0
        %253 = vmatpush.msra.mxu0 0.0
        %254 = vmatpush.msra.mxu0 0.0
        %255 = vmatpush.msra.mxu0 0.0
        %256 = vmatpush.msra.mxu0 0.0
        %257 = vmatpush.msra.mxu0 0.0
        %258 = vmatpush.msra.mxu0 0.0
        %259 = vmatpush.msra.mxu0 %v219
        %260 = vmatpush.msra.mxu0 %v218
        %261 = vmatmul.f32.gmra.mxu0 %v222
        %v262 = vpop.f32.mrf.mxu0
        %v263 = vadd.f32 0.0, %v262
        %264 = vmatmul.f32.gmra.mxu0 %v225
        %v265 = vpop.f32.mrf.mxu0
        %v266 = vadd.f32 0.0, %v265
        %267 = vmatmul.f32.gmra.mxu0 %v228
        %v268 = vpop.f32.mrf.mxu0
        %v269 = vadd.f32 0.0, %v268
        %270 = vmatmul.f32.gmra.mxu0 %v231
        %v271 = vpop.f32.mrf.mxu0
        %v272 = vadd.f32 0.0, %v271
        %273 = vmatmul.f32.gmra.mxu0 %v234
        %v274 = vpop.f32.mrf.mxu0
        %v275 = vadd.f32 0.0, %v274
        %276 = vmatmul.f32.gmra.mxu0 %v237
        %v277 = vpop.f32.mrf.mxu0
        %v278 = vadd.f32 0.0, %v277
        %279 = vmatmul.f32.gmra.mxu0 %v240
        %v280 = vpop.f32.mrf.mxu0
        %v281 = vadd.f32 0.0, %v280
        %282 = vmatmul.f32.gmra.mxu0 %v243
        %v283 = vpop.f32.mrf.mxu0
        %v284 = vadd.f32 0.0, %v283
        %285 = vdwg.mxu0
        %v287 = vsel %vm220, %v200, 0
        %v290 = vsel %vm220, %v201, 0
        %v293 = vsel %vm220, %v202, 0
        %v296 = vsel %vm220, %v203, 0
        %v299 = vsel %vm220, %v204, 0
        %v302 = vsel %vm220, %v205, 0
        %v305 = vsel %vm220, %v206, 0
        %v308 = vsel %vm220, %v207, 0
        %310 = vmatpush.msra.mxu0 0.0
        %311 = vmatpush.msra.mxu0 0.0
        %312 = vmatpush.msra.mxu0 0.0
        %313 = vmatpush.msra.mxu0 0.0
        %314 = vmatpush.msra.mxu0 0.0
        %315 = vmatpush.msra.mxu0 0.0
        %316 = vmatpush.msra.mxu0 0.0
        %317 = vmatpush.msra.mxu0 0.0
        %318 = vmatpush.msra.mxu0 0.0
        %319 = vmatpush.msra.mxu0 0.0
        %320 = vmatpush.msra.mxu0 0.0
        %321 = vmatpush.msra.mxu0 0.0
        %322 = vmatpush.msra.mxu0 0.0
        %323 = vmatpush.msra.mxu0 0.0
        %324 = vmatpush.msra.mxu0 %v209
        %325 = vmatpush.msra.mxu0 %v208
        %326 = vmatmul.f32.gmra.mxu0 %v287
        %v327 = vpop.f32.mrf.mxu0
        %v328 = vadd.f32 %v263, %v327
        %329 = vmatmul.f32.gmra.mxu0 %v290
        %v330 = vpop.f32.mrf.mxu0
        %v331 = vadd.f32 %v266, %v330
        %332 = vmatmul.f32.gmra.mxu0 %v293
        %v333 = vpop.f32.mrf.mxu0
        %v334 = vadd.f32 %v269, %v333
        %335 = vmatmul.f32.gmra.mxu0 %v296
        %v336 = vpop.f32.mrf.mxu0
        %v337 = vadd.f32 %v272, %v336
        %338 = vmatmul.f32.gmra.mxu0 %v299
        %v339 = vpop.f32.mrf.mxu0
        %v340 = vadd.f32 %v275, %v339
        %341 = vmatmul.f32.gmra.mxu0 %v302
        %v342 = vpop.f32.mrf.mxu0
        %v343 = vadd.f32 %v278, %v342
        %344 = vmatmul.f32.gmra.mxu0 %v305
        %v345 = vpop.f32.mrf.mxu0
        %v346 = vadd.f32 %v281, %v345
        %347 = vmatmul.f32.gmra.mxu0 %v308
        %v348 = vpop.f32.mrf.mxu0
        %v349 = vadd.f32 %v284, %v348
        %350 = vdwg.mxu0
        %s351 = sadd.s32 %s197, 1
        %s352 = smul.u32 %s351, 16
        %s353 = scalar_lea.vmem %s195, %s352
        %v354 = vld [vmem:[%s353] sm:$0xff]
        %v355 = vld [vmem:[%s353 + $0x10] sm:$0xff]
        %v356 = vld [vmem:[%s353 + $0x20] sm:$0xff]
        %v357 = vld [vmem:[%s353 + $0x30] sm:$0xff]
        %v358 = vld [vmem:[%s353 + $0x40] sm:$0xff]
        %v359 = vld [vmem:[%s353 + $0x50] sm:$0xff]
        %v360 = vld [vmem:[%s353 + $0x60] sm:$0xff]
        %v361 = vld [vmem:[%s353 + $0x70] sm:$0xff]
        %v362 = vld [vmem:[%s1 + $0x20] sm:$0xff]
        %v363 = vld [vmem:[%s1 + $0x28] sm:$0xff]
        %v365 = vsel %vm220, %v354, 0
        %v368 = vsel %vm220, %v355, 0
        %v371 = vsel %vm220, %v356, 0
        %v374 = vsel %vm220, %v357, 0
        %v377 = vsel %vm220, %v358, 0
        %v380 = vsel %vm220, %v359, 0
        %v383 = vsel %vm220, %v360, 0
        %v386 = vsel %vm220, %v361, 0
        %388 = vmatpush.msra.mxu0 0.0
        %389 = vmatpush.msra.mxu0 0.0
        %390 = vmatpush.msra.mxu0 0.0
        %391 = vmatpush.msra.mxu0 0.0
        %392 = vmatpush.msra.mxu0 0.0
        %393 = vmatpush.msra.mxu0 0.0
        %394 = vmatpush.msra.mxu0 0.0
        %395 = vmatpush.msra.mxu0 0.0
        %396 = vmatpush.msra.mxu0 0.0
        %397 = vmatpush.msra.mxu0 0.0
        %398 = vmatpush.msra.mxu0 0.0
        %399 = vmatpush.msra.mxu0 0.0
        %400 = vmatpush.msra.mxu0 0.0
        %401 = vmatpush.msra.mxu0 0.0
        %402 = vmatpush.msra.mxu0 %v363
        %403 = vmatpush.msra.mxu0 %v362
        %404 = vmatmul.f32.gmra.mxu0 %v365
        %v405 = vpop.f32.mrf.mxu0
        %v406 = vadd.f32 0.0, %v405
        %407 = vmatmul.f32.gmra.mxu0 %v368
        %v408 = vpop.f32.mrf.mxu0
        %v409 = vadd.f32 0.0, %v408
        %410 = vmatmul.f32.gmra.mxu0 %v371
        %v411 = vpop.f32.mrf.mxu0
        %v412 = vadd.f32 0.0, %v411
        %413 = vmatmul.f32.gmra.mxu0 %v374
        %v414 = vpop.f32.mrf.mxu0
        %v415 = vadd.f32 0.0, %v414
        %416 = vmatmul.f32.gmra.mxu0 %v377
        %v417 = vpop.f32.mrf.mxu0
        %v418 = vadd.f32 0.0, %v417
        %419 = vmatmul.f32.gmra.mxu0 %v380
        %v420 = vpop.f32.mrf.mxu0
        %v421 = vadd.f32 0.0, %v420
        %422 = vmatmul.f32.gmra.mxu0 %v383
        %v423 = vpop.f32.mrf.mxu0
        %v424 = vadd.f32 0.0, %v423
        %425 = vmatmul.f32.gmra.mxu0 %v386
        %v426 = vpop.f32.mrf.mxu0
        %v427 = vadd.f32 0.0, %v426
        %428 = vdwg.mxu0
        %v429 = vadd.f32 %v328, %v406
        %v430 = vadd.f32 %v331, %v409
        %v431 = vadd.f32 %v334, %v412
        %v432 = vadd.f32 %v337, %v415
        %v433 = vadd.f32 %v340, %v418
        %v434 = vadd.f32 %v343, %v421
        %v435 = vadd.f32 %v346, %v424
        %v436 = vadd.f32 %v349, %v427
        %v437 = vld [vmem:[%s353 + $0x1] sm:$0xff]
        %v438 = vld [vmem:[%s353 + $0x11] sm:$0xff]
        %v439 = vld [vmem:[%s353 + $0x21] sm:$0xff]
        %v440 = vld [vmem:[%s353 + $0x31] sm:$0xff]
        %v441 = vld [vmem:[%s353 + $0x41] sm:$0xff]
        %v442 = vld [vmem:[%s353 + $0x51] sm:$0xff]
        %v443 = vld [vmem:[%s353 + $0x61] sm:$0xff]
        %v444 = vld [vmem:[%s353 + $0x71] sm:$0xff]
        %v445 = vld [vmem:[%s1 + $0x30] sm:$0xff]
        %v446 = vld [vmem:[%s1 + $0x38] sm:$0xff]
        %v448 = vsel %vm220, %v437, 0
        %v451 = vsel %vm220, %v438, 0
        %v454 = vsel %vm220, %v439, 0
        %v457 = vsel %vm220, %v440, 0
        %v460 = vsel %vm220, %v441, 0
        %v463 = vsel %vm220, %v442, 0
        %v466 = vsel %vm220, %v443, 0
        %v469 = vsel %vm220, %v444, 0
        %471 = vmatpush.msra.mxu0 0.0
        %472 = vmatpush.msra.mxu0 0.0
        %473 = vmatpush.msra.mxu0 0.0
        %474 = vmatpush.msra.mxu0 0.0
        %475 = vmatpush.msra.mxu0 0.0
        %476 = vmatpush.msra.mxu0 0.0
        %477 = vmatpush.msra.mxu0 0.0
        %478 = vmatpush.msra.mxu0 0.0
        %479 = vmatpush.msra.mxu0 0.0
        %480 = vmatpush.msra.mxu0 0.0
        %481 = vmatpush.msra.mxu0 0.0
        %482 = vmatpush.msra.mxu0 0.0
        %483 = vmatpush.msra.mxu0 0.0
        %484 = vmatpush.msra.mxu0 0.0
        %485 = vmatpush.msra.mxu0 %v446
        %486 = vmatpush.msra.mxu0 %v445
        %487 = vmatmul.f32.gmra.mxu0 %v448
        %v488 = vpop.f32.mrf.mxu0
        %v489 = vadd.f32 0.0, %v488
        %490 = vmatmul.f32.gmra.mxu0 %v451
        %v491 = vpop.f32.mrf.mxu0
        %v492 = vadd.f32 0.0, %v491
        %493 = vmatmul.f32.gmra.mxu0 %v454
        %v494 = vpop.f32.mrf.mxu0
        %v495 = vadd.f32 0.0, %v494
        %496 = vmatmul.f32.gmra.mxu0 %v457
        %v497 = vpop.f32.mrf.mxu0
        %v498 = vadd.f32 0.0, %v497
        %499 = vmatmul.f32.gmra.mxu0 %v460
        %v500 = vpop.f32.mrf.mxu0
        %v501 = vadd.f32 0.0, %v500
        %502 = vmatmul.f32.gmra.mxu0 %v463
        %v503 = vpop.f32.mrf.mxu0
        %v504 = vadd.f32 0.0, %v503
        %505 = vmatmul.f32.gmra.mxu0 %v466
        %v506 = vpop.f32.mrf.mxu0
        %v507 = vadd.f32 0.0, %v506
        %508 = vmatmul.f32.gmra.mxu0 %v469
        %v509 = vpop.f32.mrf.mxu0
        %v510 = vadd.f32 0.0, %v509
        %511 = vdwg.mxu0
        %v512 = vadd.f32 %v429, %v489
        %v513 = vadd.f32 %v430, %v492
        %v514 = vadd.f32 %v431, %v495
        %v515 = vadd.f32 %v432, %v498
        %v516 = vadd.f32 %v433, %v501
        %v517 = vadd.f32 %v434, %v504
        %v518 = vadd.f32 %v435, %v507
        %v519 = vadd.f32 %v436, %v510
        %520 = vst [vmem:[%s183] sm:$0xff] %v512
        %521 = vst [vmem:[%s183 + $0x8] sm:$0xff] %v513
        %522 = vst [vmem:[%s183 + $0x10] sm:$0xff] %v514
        %523 = vst [vmem:[%s183 + $0x18] sm:$0xff] %v515
        %524 = vst [vmem:[%s183 + $0x20] sm:$0xff] %v516
        %525 = vst [vmem:[%s183 + $0x28] sm:$0xff] %v517
        %526 = vst [vmem:[%s183 + $0x30] sm:$0xff] %v518
        %527 = vst [vmem:[%s183 + $0x38] sm:$0xff] %v519
        %v528 = vadd.f32 %v512, %v513
        %v529 = vadd.f32 %v528, %v514
        %v530 = vadd.f32 %v529, %v515
        %v531 = vadd.f32 %v530, %v516
        %v532 = vadd.f32 %v531, %v517
        %v533 = vadd.f32 %v532, %v518
        %v534 = vadd.f32 %v533, %v519
        %v535 = vrot.slane %v534, 4
        %v536 = vadd.f32 %v534, %v535
        %v537 = vrot.slane %v536, 2
        %v538 = vadd.f32 %v536, %v537
        %v539 = vrot.slane %v538, 1
        %v540 = vadd.f32 %v538, %v539
        %541 = vst [vmem:[%s190] sm:$0x1] %v540
        %v542 = vmul.f32 %v512, %v512
        %v543 = vmul.f32 %v513, %v513
        %v544 = vmul.f32 %v514, %v514
        %v545 = vmul.f32 %v515, %v515
        %v546 = vmul.f32 %v516, %v516
        %v547 = vmul.f32 %v517, %v517
        %v548 = vmul.f32 %v518, %v518
        %v549 = vmul.f32 %v519, %v519
        %v550 = vadd.f32 %v542, %v543
        %v551 = vadd.f32 %v550, %v544
        %v552 = vadd.f32 %v551, %v545
        %v553 = vadd.f32 %v552, %v546
        %v554 = vadd.f32 %v553, %v547
        %v555 = vadd.f32 %v554, %v548
        %v556 = vadd.f32 %v555, %v549
        %v557 = vrot.slane %v556, 4
        %v558 = vadd.f32 %v556, %v557
        %v559 = vrot.slane %v558, 2
        %v560 = vadd.f32 %v558, %v559
        %v561 = vrot.slane %v560, 1
        %v562 = vadd.f32 %v560, %v561
        %563 = vst [vmem:[%s190 + $0x1] sm:$0x1] %v562
        %s564 = sand.u32 %s90, 1
        %s565 = scalar_lea.sflag [#allocation3], %s564
        %s566 = sand.u32 %s90, 1
        %s567 = smul.addr %s566, 64
        %s568 = scalar_lea.vmem [#allocation2], %s567
        %s569 = sand.u32 %s118, 1
        %s570 = scalar_lea.sflag [#allocation5], %s569
        %s571 = sand.u32 %s118, 1
        %s572 = smul.addr %s571, 2
        %s573 = scalar_lea.vmem [#allocation4], %s572
        // Predicated region
        $region29: #{tpu_custom_call.1} parent=27 // pred_check
          %p574 = pneg %p100
        $region30: #{tpu_custom_call.1} parent=27 // pred_check_branch
          %576 = sbr.rel (%p574) target = $region32
        $region31: #{tpu_custom_call.1} parent=27 // pred_region
          %s577 = smul.u32 8, %s26
          %579 = vsyncadd %s565, 0
          %s580 = smul.addr %s25, 8
          %s581 = sadd.s32 %s577, %s580
          %s582 = smul.addr %s581, 8
          %s583 = scalar_lea.hbm %s2, %s582
          %s584 = sshll.u32 %s568, 4
          %s585 = int_to_ptr.vmem [resolvable:$true] %s584
          %s586 = sshll.u32 %s583, 4
          %s587 = int_to_ptr.hbm [resolvable:$true] %s586
          %592 = dma.vmem_to_hbm [thread:$0]  %s585, 1024, %s587, %s565, 128, 128, 8
        $region32: #{tpu_custom_call.1} parent=27 // pred_fallthru
          _
        // Predicated region
        $region33: #{tpu_custom_call.1} parent=27 // pred_check
          %p593 = pneg %p128
        $region34: #{tpu_custom_call.1} parent=27 // pred_check_branch
          %595 = sbr.rel (%p593) target = $region36
        $region35: #{tpu_custom_call.1} parent=27 // pred_region
          %597 = vsyncadd %s570, 0
          %s598 = sadd.s32 %s26, %s25
          %s599 = smul.addr %s598, 2
          %s600 = scalar_lea.hbm %s3, %s599
          %s602 = sshll.u32 %s573, 4
          %s603 = int_to_ptr.vmem [resolvable:$true] %s602
          %s604 = sshll.u32 %s600, 4
          %s605 = int_to_ptr.hbm [resolvable:$true] %s604
          %607 = dma.vmem_to_hbm [thread:$0]  %s603, 32, %s605, %s570
        $region36: #{tpu_custom_call.1} parent=27 // pred_fallthru
          _
      $region28: #{tpu_custom_call.1} parent=5 // pred_fallthru
        _
      %p608 = scmp.le.s32.totalorder 2, %s16
      // Predicated region
      $region37: #{tpu_custom_call.1} parent=5 // pred_check
        %p609 = pneg %p608
      $region38: #{tpu_custom_call.1} parent=5 // pred_check_branch
        %611 = sbr.rel (%p609) target = $region40
      $region39: #{tpu_custom_call.1} parent=5 // pred_region
        %s612 = ssub.s32 %s16, 2
        // Predicated region
        $region41: #{tpu_custom_call.1} parent=39 // pred_check
          %p613 = pneg %p106
        $region42: #{tpu_custom_call.1} parent=39 // pred_check_branch
          %615 = sbr.rel (%p613) target = $region44
        $region43: #{tpu_custom_call.1} parent=39 // pred_region
          %s616 = sand.u32 %s91, 1
          %s617 = scalar_lea.sflag [#allocation3], %s616
          %s618 = sand.u32 %s91, 1
          %s619 = smul.addr %s618, 64
          %s620 = scalar_lea.vmem [#allocation2], %s619
          %622 = dma.done %s617, 1024
        $region44: #{tpu_custom_call.1} parent=39 // pred_fallthru
          _
        // Predicated region
        $region45: #{tpu_custom_call.1} parent=39 // pred_check
          %p623 = pneg %p134
        $region46: #{tpu_custom_call.1} parent=39 // pred_check_branch
          %625 = sbr.rel (%p623) target = $region48
        $region47: #{tpu_custom_call.1} parent=39 // pred_region
          %s626 = sand.u32 %s119, 1
          %s627 = scalar_lea.sflag [#allocation5], %s626
          %s628 = sand.u32 %s119, 1
          %s629 = smul.addr %s628, 2
          %s630 = scalar_lea.vmem [#allocation4], %s629
          %632 = dma.done %s627, 32
        $region48: #{tpu_custom_call.1} parent=39 // pred_fallthru
          _
      $region40: #{tpu_custom_call.1} parent=5 // pred_fallthru
        _
    $region6: #{tpu_custom_call.1} parent=1 // loop_footer
      %s20 = sadd.s32 1, %s16
    $region7: #{tpu_custom_call.1} parent=1 // loop_footer_branch
      %15 = sbr.rel target = $region3
    $region8: #{tpu_custom_call.1} parent=1 // loop_exit
      _
    %633 = vsyncpa [#allocation3], 1
    %s634 = scalar_lea.sflag [#allocation3], 1
    %635 = vsyncpa %s634, 1
    %636 = vsyncpa [#allocation5], 1
    %s637 = scalar_lea.sflag [#allocation5], 1
    %638 = vsyncpa %s637, 1

</llo_original>
